<compile_context>
chip_gen: v7x
topology: tpu7x:2x2x1
jax: 0.10.0
libtpu: 0.0.40
codegen_flags: <defaults>
</compile_context>

<pallas_src>
import functools

import jax
import jax.numpy as jnp
from jax import lax
from jax.experimental import pallas as pl
from jax.experimental.pallas import tpu as pltpu


# ----------------------------------------------------------------------------
# Pallas kernel: fused pwconv1 -> per-channel quadratic -> pwconv2.
#
# Layout: channels on sublanes, pixels on lanes.  One grid step consumes a
# (B, C, TN) tile of the flattened NCHW activations and produces a (B, C, TN)
# tile.  Inside the kernel we iterate over lane sub-chunks of size `sub` so
# the f32 intermediates stay small even when TN is large:
#
#   h = W1^T @ x             (E, sub), f32 accumulation on the MXU
#   p = (c2*h + c1)*h + c0   per hidden channel (b1 pre-folded into c0/c1)
#   y = W2^T @ p + b2        (C, sub), f32 accumulation
# ----------------------------------------------------------------------------
def _mlp_poly_kernel(x_ref, w1t_ref, coef_ref, w2t_ref, b2_ref, o_ref, *, sub):
    # Grid-invariant operands (same block every step; stay resident in VMEM).
    w1t = w1t_ref[...]                                   # (E, C)
    w2t = w2t_ref[...]                                   # (C, E)
    cf = coef_ref[...]                                   # (E, 3) f32
    c0, c1, c2 = cf[:, 0:1], cf[:, 1:2], cf[:, 2:3]
    b2 = b2_ref[...]                                     # (C, 1) f32

    bsz, _, tn = x_ref.shape
    nsub = tn // sub                                      # tile picker guarantees exact

    for bi in range(bsz):                                 # static, small-batch unroll
        def body(i, carry):
            off = pl.multiple_of(i * sub, sub)            # aligned lane offset
            # In-kernel cast to the (possibly bf16) weight dtype; no host-side
            # HBM pass for the cast.  Accumulation stays f32.
            xs = x_ref[bi, :, pl.ds(off, sub)].astype(w1t.dtype)       # (C, sub)
            h = jnp.dot(w1t, xs, preferred_element_type=jnp.float32)   # (E, sub) f32
            p = (c2 * h + c1) * h + c0                                  # Horner, f32
            y = jnp.dot(w2t, p.astype(w2t.dtype),
                        preferred_element_type=jnp.float32)             # (C, sub) f32
            o_ref[bi, :, pl.ds(off, sub)] = (y + b2).astype(o_ref.dtype)
            return carry

        lax.fori_loop(0, nsub, body, 0, unroll=nsub <= 8)


def _round_up(x, m):
    return ((x + m - 1) // m) * m


def _chip_defaults():
    """Per-generation scoped-VMEM limit and minimum grid-step count."""
    kind = ""
    try:
        kind = jax.devices()[0].device_kind.lower()
    except Exception:
        pass
    if "v5" in kind or "v6" in kind:
        # Single TensorCore, 128 MiB physical VMEM: big tiles, few steps.
        return dict(vmem_limit=96 * 1024 * 1024, min_steps=2)
    if "v7" in kind:
        # 2 TensorCores, 64 MiB VMEM per TC: cap scoped VMEM, keep steps for
        # megacore sharding along the "parallel" pixel axis.
        return dict(vmem_limit=48 * 1024 * 1024, min_steps=4)
    # Unknown chip: conservative.
    return dict(vmem_limit=48 * 1024 * 1024, min_steps=2)


def _pick_pixel_tile(npix, bsz, c, e, in_bytes, w_bytes, out_bytes,
                     vmem_limit, *, target, sub_max, min_steps):
    """Largest lane tile (multiple of 128) that fits the VMEM budget
    (including the double-buffered activations, the double-buffered
    grid-invariant weights and the f32 intermediates) while keeping at least
    `min_steps` grid steps — but never shrinking below 512 lanes just for
    step count (small tiles are step-overhead bound)."""
    npix_pad = _round_up(npix, 128)
    tn = min(_round_up(target, 128), npix_pad)
    budget = int(vmem_limit * 0.75)

    def vmem_bytes(t):
        sub = min(t, sub_max)
        act = 2 * bsz * c * t * (in_bytes + out_bytes)       # double-buffered in + out
        wts = 2 * (2 * e * c * w_bytes + (3 * e + c) * 4)    # double-buffered invariants
        mid = (2 * e + 2 * c) * sub * 4                      # h, p, x_sub, y_sub (f32)
        return act + wts + mid

    while tn > 128 and vmem_bytes(tn) > budget:
        tn -= 128
    if pl.cdiv(npix, tn) < min_steps:
        tn = max(512, min(tn, _round_up(pl.cdiv(npix, min_steps), 128)))
        tn = min(tn, npix_pad)
    if tn > sub_max:
        tn = (tn // sub_max) * sub_max                       # exact in-kernel sub-chunking
    return max(tn, 128)


def mlp_poly_pallas(x_nchw, w1, b1, coef, w2, b2, *, compute_dtype=jnp.bfloat16,
                    tile_target=16384, sub_max=1024,
                    vmem_limit_bytes=None, min_steps=None):
    """Fused per-pixel MLP applied to an NCHW tensor (returns NCHW).

    x_nchw : (B, C, H, W)
    w1     : (C, E), b1: (1, E)
    coef   : (3, E) per-channel quadratic c0 + c1*t + c2*t^2
    w2     : (E, C), b2: (1, C)
    compute_dtype : streaming dtype for weights / MXU operands (default bf16;
                    pass None for full f32).  Accumulation, polynomial and
                    biases are always f32; activations are cast in-kernel.
    """
    b, c, hh, ww = x_nchw.shape
    e = w1.shape[1]
    npix = hh * ww
    out_dtype = x_nchw.dtype

    defaults = _chip_defaults()
    if vmem_limit_bytes is None:
        vmem_limit_bytes = defaults["vmem_limit"]
    if min_steps is None:
        min_steps = defaults["min_steps"]

    # Host-side operand prep (tiny, grid-invariant): transpose weights for the
    # channels-on-sublanes layout and fold b1 into the quadratic coefficients:
    #   poly(u + b1) = c2*u^2 + (c1 + 2*c2*b1)*u + (c0 + c1*b1 + c2*b1^2)
    b1v = jnp.reshape(b1, (-1,)).astype(jnp.float32)
    c0 = coef[0].astype(jnp.float32)
    c1 = coef[1].astype(jnp.float32)
    c2 = coef[2].astype(jnp.float32)
    coef_folded = jnp.stack(
        [c0 + c1 * b1v + c2 * b1v * b1v, c1 + 2.0 * c2 * b1v, c2], axis=-1)  # (E, 3)
    w_dtype = compute_dtype if compute_dtype is not None else w1.dtype
    w1t = jnp.transpose(w1).astype(w_dtype)                 # (E, C)
    w2t = jnp.transpose(w2).astype(w_dtype)                 # (C, E)
    b2c = jnp.reshape(b2, (-1, 1)).astype(jnp.float32)      # (C, 1)

    # Contiguous flattened view; NO host-side dtype cast of the activations
    # (cast happens in-kernel, avoiding an extra HBM read+write pass).
    x3 = x_nchw.reshape(b, c, npix)

    tn = _pick_pixel_tile(
        npix, b, c, e,
        in_bytes=x3.dtype.itemsize,
        w_bytes=jnp.dtype(w_dtype).itemsize,
        out_bytes=jnp.dtype(out_dtype).itemsize,
        vmem_limit=vmem_limit_bytes,
        target=tile_target, sub_max=sub_max, min_steps=min_steps)
    sub = min(tn, sub_max)
    grid = (pl.cdiv(npix, tn),)

    kernel = functools.partial(_mlp_poly_kernel, sub=sub)

    out = pl.pallas_call(
        kernel,
        out_shape=jax.ShapeDtypeStruct((b, c, npix), out_dtype),
        grid_spec=pl.GridSpec(
            grid=grid,
            in_specs=[
                pl.BlockSpec((b, c, tn), lambda j: (0, 0, j)),   # activations (fat step)
                pl.BlockSpec((e, c), lambda j: (0, 0)),           # W1^T (grid-invariant)
                pl.BlockSpec((e, 3), lambda j: (0, 0)),           # folded poly coef
                pl.BlockSpec((c, e), lambda j: (0, 0)),           # W2^T
                pl.BlockSpec((c, 1), lambda j: (0, 0)),           # b2
            ],
            out_specs=pl.BlockSpec((b, c, tn), lambda j: (0, 0, j)),
        ),
        compiler_params=pltpu.CompilerParams(
            dimension_semantics=("parallel",),
            vmem_limit_bytes=vmem_limit_bytes,
        ),
    )(x3, w1t, coef_folded, w2t, b2c)
    return out.reshape(b, c, hh, ww)


# ----------------------------------------------------------------------------
# Frequency-domain ideal upsample / low-pass filter (UpsampleRFFT, LPF_RFFT)
# ----------------------------------------------------------------------------
# TODO(synk): FFT has no Pallas TPU primitive; the rfft-based resampling and
#             filtering stay in plain JAX (XLA FFT) around the Pallas MLP kernel.
def upsample_rfft(x, up=2):
    """Ideal band-limited (sinc) upsampling by `up` on real NCHW input
    (H, W even).  rfft2-based: half the FFT work / spectrum memory of fft2,
    zero spectrum preallocated and filled with slice updates (no concats)."""
    b, ch, h, w = x.shape
    if up == 1:
        return x
    assert up == 2 and h % 2 == 0 and w % 2 == 0
    xf = jnp.fft.rfft2(x)                                # (B, C, H, W//2+1) complex
    ho, wo = h * up, w * up
    # Halve the old W-Nyquist column (exact split of the Nyquist bin).
    low = xf.at[..., w // 2].multiply(0.5)               # (B, C, H, W//2+1)
    nyq_row = 0.5 * low[..., h // 2 : h // 2 + 1, :]     # halved old H-Nyquist row
    yf = jnp.zeros((b, ch, ho, wo // 2 + 1), xf.dtype)
    yf = yf.at[..., : h // 2, : w // 2 + 1].set(low[..., : h // 2, :])
    yf = yf.at[..., h // 2 : h // 2 + 1, : w // 2 + 1].set(nyq_row)
    yf = yf.at[..., ho - h // 2 : ho - h // 2 + 1, : w // 2 + 1].set(nyq_row)
    yf = yf.at[..., ho - h // 2 + 1 :, : w // 2 + 1].set(low[..., h // 2 + 1 :, :])
    y = jnp.fft.irfft2(yf, s=(ho, wo)) * float(up * up)
    return y.astype(x.dtype)


def lpf_rfft(x, cutoff=0.5):
    """Ideal low-pass filter in the rfft2 domain on NCHW input."""
    _, _, h, w = x.shape
    xf = jnp.fft.rfft2(x)

    def rect_1d(n):
        lo = int((n * cutoff) // 2)
        hi = n - lo
        r = jnp.ones((n,), jnp.float32)
        r = r.at[lo + 1 : hi].set(0.0)
        if (n * cutoff) % 2 == 0:  # halve the bin exactly at the target-rate Nyquist
            r = r.at[lo].set(0.5)
            r = r.at[hi % n].set(0.5)
        return r

    mask = rect_1d(h)[:, None] * rect_1d(w)[None, : w // 2 + 1]
    y = jnp.fft.irfft2(xf * mask.astype(xf.dtype), s=(h, w))
    return y.astype(x.dtype)


# ----------------------------------------------------------------------------
# Full AALMLP forward
# ----------------------------------------------------------------------------
def aal_mlp_forward(x, params, up=2, cutoff=0.5, compute_dtype=jnp.bfloat16):
    """x: (B, H, W, C) channels-last (same convention as the PyTorch module)."""
    xc = jnp.transpose(x, (0, 3, 1, 2))            # NCHW (module-boundary permute)
    xc = upsample_rfft(xc, up)                     # (B, C, up*H, up*W)
    # Fused pointwise MLP runs directly on NCHW; no NHWC<->NCHW round trip.
    xc = mlp_poly_pallas(xc, params["w1"], params["b1"], params["coef"],
                         params["w2"], params["b2"], compute_dtype=compute_dtype)
    xc = lpf_rfft(xc, cutoff)
    xc = xc[:, :, ::up, ::up]                      # (B, C, H, W)
    return jnp.transpose(xc, (0, 2, 3, 1))         # back to channels-last


def init_params(key, dim, expand_ratio):
    hid = dim * expand_ratio
    k1, k2, k3, k4 = jax.random.split(key, 4)
    w1 = jax.random.normal(k1, (dim, hid), jnp.float32) * (1.0 / jnp.sqrt(dim))
    b1 = jax.random.normal(k2, (1, hid), jnp.float32) * 0.01
    w2 = jax.random.normal(k3, (hid, dim), jnp.float32) * (1.0 / jnp.sqrt(hid))
    b2 = jax.random.normal(k4, (1, dim), jnp.float32) * 0.01
    # PolyActPerChannel default per-channel quadratic: c0 + c1*x + c2*x^2
    init_coef = jnp.array([0.3078363963058826, 0.5, 0.0169394634313126], jnp.float32)
    coef = jnp.tile(init_coef[:, None], (1, hid))  # (3, hid)
    return dict(w1=w1, b1=b1, w2=w2, b2=b2, coef=coef)


def _mlp_poly_ref(x_nchw, w1, b1, coef, w2, b2):
    """Pure-JAX reference for the fused MLP (NCHW in / NCHW out)."""
    b, c, hh, ww = x_nchw.shape
    rows = jnp.transpose(x_nchw, (0, 2, 3, 1)).reshape(-1, c)
    h = rows @ w1 + b1.reshape(1, -1)
    h = coef[2] * h * h + coef[1] * h + coef[0]
    y = h @ w2 + b2.reshape(1, -1)
    return jnp.transpose(y.reshape(b, hh, ww, c), (0, 3, 1, 2))


if __name__ == "__main__":
    B, H, W, DIM, EXPAND = 2, 16, 16, 8, 4
    key = jax.random.PRNGKey(0)
    kx, kp = jax.random.split(key)
    x = jax.random.normal(kx, (B, H, W, DIM), jnp.float32)
    params = init_params(kp, DIM, EXPAND)

    # --- Check 1: fused Pallas MLP (f32 streaming) vs pure-JAX reference. ---
    xt = jax.random.normal(jax.random.PRNGKey(1), (B, DIM, 2 * H, 2 * W), jnp.float32)
    want = _mlp_poly_ref(xt, params["w1"], params["b1"], params["coef"],
                         params["w2"], params["b2"])
    got = mlp_poly_pallas(xt, params["w1"], params["b1"], params["coef"],
                          params["w2"], params["b2"], compute_dtype=None)
    assert jnp.allclose(got, want, atol=1e-3, rtol=1e-3), "Pallas MLP mismatch (f32)"

    # --- Check 2: default bf16 weight streaming (f32 accumulation / poly). ---
    got_bf16 = mlp_poly_pallas(xt, params["w1"], params["b1"], params["coef"],
                               params["w2"], params["b2"])
    assert jnp.allclose(got_bf16, want, atol=1e-1, rtol=1e-1), "Pallas MLP mismatch (bf16)"

    # --- Check 3: full forward (upsample -> MLP -> LPF -> decimate), f32. ---
    def fwd_ref(xx, pp):
        xc = jnp.transpose(xx, (0, 3, 1, 2))
        xc = upsample_rfft(xc, 2)
        xc = _mlp_poly_ref(xc, pp["w1"], pp["b1"], pp["coef"], pp["w2"], pp["b2"])
        xc = lpf_rfft(xc, 0.5)
        xc = xc[:, :, ::2, ::2]
        return jnp.transpose(xc, (0, 2, 3, 1))

    fwd_f32 = jax.jit(functools.partial(aal_mlp_forward, up=2, cutoff=0.5,
                                        compute_dtype=None))
    out = jax.block_until_ready(fwd_f32(x, params))
    assert out.shape == (B, H, W, DIM), out.shape
    assert jnp.isfinite(out).all()
    ref = fwd_ref(x, params)
    assert jnp.allclose(out, ref, atol=2e-3, rtol=2e-3), "full forward mismatch (f32)"

    # --- Check 4: full forward with default bf16 weight streaming. ---
    fwd = jax.jit(functools.partial(aal_mlp_forward, up=2, cutoff=0.5))
    out_bf = jax.block_until_ready(fwd(x, params))
    assert out_bf.shape == (B, H, W, DIM)
    assert jnp.isfinite(out_bf).all()
    assert jnp.allclose(out_bf, ref, atol=1e-1, rtol=1e-1), "full forward mismatch (bf16)"

    print("KERNEL_OK")
</pallas_src>

<mosaic_0001>
module attributes {stable_mosaic.version = 11 : i64} {
  func.func @_mlp_poly_kernel(%arg0: i32, %arg1: memref<2x8x512xf32, #tpu.memory_space<vmem>>, %arg2: memref<32x8xf32, #tpu.memory_space<vmem>>, %arg3: memref<32x3xf32, #tpu.memory_space<vmem>>, %arg4: memref<8x32xf32, #tpu.memory_space<vmem>>, %arg5: memref<8x1xf32, #tpu.memory_space<vmem>>, %arg6: memref<2x8x512xf32, #tpu.memory_space<vmem>>) attributes {dimension_semantics = [#tpu.dimension_semantics<parallel>], iteration_bounds = array<i64: 2>, scalar_prefetch = 0 : i64, scratch_operands = 0 : i64, tpu.core_type = #tpu.core_type<tc>, window_params = [{transform_indices = @transform_0, window_bounds = array<i64: 2, 8, 512>}, {pipeline_mode = #tpu.pipeline_mode<synchronous>, transform_indices = @transform_1, window_bounds = array<i64: 32, 8>}, {pipeline_mode = #tpu.pipeline_mode<synchronous>, transform_indices = @transform_2, window_bounds = array<i64: 32, 3>}, {pipeline_mode = #tpu.pipeline_mode<synchronous>, transform_indices = @transform_3, window_bounds = array<i64: 8, 32>}, {pipeline_mode = #tpu.pipeline_mode<synchronous>, transform_indices = @transform_4, window_bounds = array<i64: 8, 1>}, {transform_indices = @transform_5, window_bounds = array<i64: 2, 8, 512>}]} {
    %c0 = arith.constant 0 : index
    %c0_0 = arith.constant 0 : index
    %0 = vector.load %arg2[%c0, %c0_0] : memref<32x8xf32, #tpu.memory_space<vmem>>, vector<32x8xf32>
    %c0_1 = arith.constant 0 : index
    %c0_2 = arith.constant 0 : index
    %1 = vector.load %arg4[%c0_1, %c0_2] : memref<8x32xf32, #tpu.memory_space<vmem>>, vector<8x32xf32>
    %c0_3 = arith.constant 0 : index
    %c0_4 = arith.constant 0 : index
    %2 = vector.load %arg3[%c0_3, %c0_4] : memref<32x3xf32, #tpu.memory_space<vmem>>, vector<32x3xf32>
    %3 = vector.extract_strided_slice %2 {offsets = [0, 0], sizes = [32, 1], strides = [1, 1]} : vector<32x3xf32> to vector<32x1xf32>
    %4 = vector.extract_strided_slice %2 {offsets = [0, 1], sizes = [32, 1], strides = [1, 1]} : vector<32x3xf32> to vector<32x1xf32>
    %5 = vector.extract_strided_slice %2 {offsets = [0, 2], sizes = [32, 1], strides = [1, 1]} : vector<32x3xf32> to vector<32x1xf32>
    %c0_5 = arith.constant 0 : index
    %c0_6 = arith.constant 0 : index
    %6 = vector.load %arg5[%c0_5, %c0_6] : memref<8x1xf32, #tpu.memory_space<vmem>>, vector<8x1xf32>
    %c0_i32 = arith.constant 0 : i32
    %c512_i32 = arith.constant 512 : i32
    %7 = arith.muli %c0_i32, %c512_i32 : i32
    %8 = tpu.assume_multiple %7, 512 : i32
    %c0_7 = arith.constant 0 : index
    %c0_8 = arith.constant 0 : index
    %9 = arith.index_cast %8 : i32 to index
    %10 = vector.load %arg1[%c0_7, %c0_8, %9] : memref<2x8x512xf32, #tpu.memory_space<vmem>>, vector<1x8x512xf32>
    %11 = vector.shape_cast %10 : vector<1x8x512xf32> to vector<8x512xf32>
    %cst = arith.constant dense<0.000000e+00> : vector<32x512xf32>
    %12 = tpu.matmul %0, %11, %cst {dimension_numbers = #tpu.dot_dimension_numbers<[1], [0], [0], [1], [0, 0, 1, 1], [], []>} : vector<32x8xf32>, vector<8x512xf32>, vector<32x512xf32> -> vector<32x512xf32>
    %13 = vector.broadcast %5 : vector<32x1xf32> to vector<32x512xf32>
    %14 = arith.mulf %13, %12 : vector<32x512xf32>
    %15 = vector.broadcast %4 : vector<32x1xf32> to vector<32x512xf32>
    %16 = arith.addf %14, %15 : vector<32x512xf32>
    %17 = arith.mulf %16, %12 : vector<32x512xf32>
    %18 = vector.broadcast %3 : vector<32x1xf32> to vector<32x512xf32>
    %19 = arith.addf %17, %18 : vector<32x512xf32>
    %cst_9 = arith.constant dense<0.000000e+00> : vector<8x512xf32>
    %20 = tpu.matmul %1, %19, %cst_9 {dimension_numbers = #tpu.dot_dimension_numbers<[1], [0], [0], [1], [0, 0, 1, 1], [], []>} : vector<8x32xf32>, vector<32x512xf32>, vector<8x512xf32> -> vector<8x512xf32>
    %21 = vector.broadcast %6 : vector<8x1xf32> to vector<8x512xf32>
    %22 = arith.addf %20, %21 : vector<8x512xf32>
    %c0_10 = arith.constant 0 : index
    %c0_11 = arith.constant 0 : index
    %23 = arith.index_cast %8 : i32 to index
    %24 = vector.load %arg6[%c0_10, %c0_11, %23] : memref<2x8x512xf32, #tpu.memory_space<vmem>>, vector<1x8x512xf32>
    %25 = vector.shape_cast %24 : vector<1x8x512xf32> to vector<8x512xf32>
    %26 = vector.shape_cast %22 : vector<8x512xf32> to vector<1x8x512xf32>
    tpu.vector_store %arg6[%c0_10, %c0_11, %23], %26 {strides = array<i32>} : memref<2x8x512xf32, #tpu.memory_space<vmem>>, vector<1x8x512xf32>,
    %c1_i32 = arith.constant 1 : i32
    %c0_i32_12 = arith.constant 0 : i32
    %c512_i32_13 = arith.constant 512 : i32
    %27 = arith.muli %c0_i32_12, %c512_i32_13 : i32
    %28 = tpu.assume_multiple %27, 512 : i32
    %c1 = arith.constant 1 : index
    %c0_14 = arith.constant 0 : index
    %29 = arith.index_cast %28 : i32 to index
    %30 = vector.load %arg1[%c1, %c0_14, %29] : memref<2x8x512xf32, #tpu.memory_space<vmem>>, vector<1x8x512xf32>
    %31 = vector.shape_cast %30 : vector<1x8x512xf32> to vector<8x512xf32>
    %cst_15 = arith.constant dense<0.000000e+00> : vector<32x512xf32>
    %32 = tpu.matmul %0, %31, %cst_15 {dimension_numbers = #tpu.dot_dimension_numbers<[1], [0], [0], [1], [0, 0, 1, 1], [], []>} : vector<32x8xf32>, vector<8x512xf32>, vector<32x512xf32> -> vector<32x512xf32>
    %33 = vector.broadcast %5 : vector<32x1xf32> to vector<32x512xf32>
    %34 = arith.mulf %33, %32 : vector<32x512xf32>
    %35 = vector.broadcast %4 : vector<32x1xf32> to vector<32x512xf32>
    %36 = arith.addf %34, %35 : vector<32x512xf32>
    %37 = arith.mulf %36, %32 : vector<32x512xf32>
    %38 = vector.broadcast %3 : vector<32x1xf32> to vector<32x512xf32>
    %39 = arith.addf %37, %38 : vector<32x512xf32>
    %cst_16 = arith.constant dense<0.000000e+00> : vector<8x512xf32>
    %40 = tpu.matmul %1, %39, %cst_16 {dimension_numbers = #tpu.dot_dimension_numbers<[1], [0], [0], [1], [0, 0, 1, 1], [], []>} : vector<8x32xf32>, vector<32x512xf32>, vector<8x512xf32> -> vector<8x512xf32>
    %41 = vector.broadcast %6 : vector<8x1xf32> to vector<8x512xf32>
    %42 = arith.addf %40, %41 : vector<8x512xf32>
    %c1_17 = arith.constant 1 : index
    %c0_18 = arith.constant 0 : index
    %43 = arith.index_cast %28 : i32 to index
    %44 = vector.load %arg6[%c1_17, %c0_18, %43] : memref<2x8x512xf32, #tpu.memory_space<vmem>>, vector<1x8x512xf32>
    %45 = vector.shape_cast %44 : vector<1x8x512xf32> to vector<8x512xf32>
    %46 = vector.shape_cast %42 : vector<8x512xf32> to vector<1x8x512xf32>
    tpu.vector_store %arg6[%c1_17, %c0_18, %43], %46 {strides = array<i32>} : memref<2x8x512xf32, #tpu.memory_space<vmem>>, vector<1x8x512xf32>,
    %c1_i32_19 = arith.constant 1 : i32
    return
  }
  func.func @transform_0(%arg0: i32) -> (i32, i32, i32) {
    %c0_i32 = arith.constant 0 : i32
    %c0_i32_0 = arith.constant 0 : i32
    %c0_i32_1 = arith.constant 0 : i32
    return %c0_i32, %c0_i32_0, %arg0 : i32, i32, i32
  }
  func.func @transform_1(%arg0: i32) -> (i32, i32) {
    %c0_i32 = arith.constant 0 : i32
    %c0_i32_0 = arith.constant 0 : i32
    %c0_i32_1 = arith.constant 0 : i32
    return %c0_i32, %c0_i32_0 : i32, i32
  }
  func.func @transform_2(%arg0: i32) -> (i32, i32) {
    %c0_i32 = arith.constant 0 : i32
    %c0_i32_0 = arith.constant 0 : i32
    %c0_i32_1 = arith.constant 0 : i32
    return %c0_i32, %c0_i32_0 : i32, i32
  }
  func.func @transform_3(%arg0: i32) -> (i32, i32) {
    %c0_i32 = arith.constant 0 : i32
    %c0_i32_0 = arith.constant 0 : i32
    %c0_i32_1 = arith.constant 0 : i32
    return %c0_i32, %c0_i32_0 : i32, i32
  }
  func.func @transform_4(%arg0: i32) -> (i32, i32) {
    %c0_i32 = arith.constant 0 : i32
    %c0_i32_0 = arith.constant 0 : i32
    %c0_i32_1 = arith.constant 0 : i32
    return %c0_i32, %c0_i32_0 : i32, i32
  }
  func.func @transform_5(%arg0: i32) -> (i32, i32, i32) {
    %c0_i32 = arith.constant 0 : i32
    %c0_i32_0 = arith.constant 0 : i32
    %c0_i32_1 = arith.constant 0 : i32
    return %c0_i32, %c0_i32_0, %arg0 : i32, i32, i32
  }
}

</mosaic_0001>

<llo_original>
// kernel: tpu_custom_call.1
$region0: #{tpu_custom_call.1}
  #allocation0 [shape = 'u32[]', space=smem, size = 0x4, offset = 0x4, fixed_abs, tag = 'smem constant byte address 0x4 - core index']
  #allocation1 [shape = 'u32[144,128]{1,0:T(1,128)}', space=vmem, size = 0x12000, scoped, tag = 'internal scratch']
  %s0 = inlined_call_operand.hbm [shape: f32[2,8,1024], index: 0, kind: input, shape index: {}]
  %s1 = inlined_call_operand.vmem [shape: f32[32,8], index: 1, kind: input, shape index: {}]
  %s2 = inlined_call_operand.vmem [shape: f32[32,3], index: 2, kind: input, shape index: {}]
  %s3 = inlined_call_operand.vmem [shape: f32[8,32], index: 3, kind: input, shape index: {}]
  %s4 = inlined_call_operand.vmem [shape: f32[8,1], index: 4, kind: input, shape index: {}]
  %s5 = inlined_call_operand.hbm [shape: f32[2,8,1024], index: 5, kind: output, shape index: {}]
  %s6 = sld [smem:[#allocation0]]
  $region57: #{tpu_custom_call.1} parent=0
    _
  %s8 = ssub.s32 1, %s6
  %s9 = scalar_select 0, %s8, %s6
  $region1: #{tpu_custom_call.1} parent=0
    #allocation2 [shape = 'u8[65536]{0}', space=vmem, size = 0x10000, scoped, tag = 'input window, operand 0']
    #allocation3 [shape = 's32[2]{0}', space=sflag, size = 0x8, scoped, tag = 'scoped memory for tpu_custom_call.1']
    #allocation4 [shape = 's32[2]{0}', space=sflag, size = 0x8, scoped, tag = 'scoped memory for tpu_custom_call.1']
    #allocation5 [shape = 'u8[65536]{0}', space=vmem, size = 0x10000, scoped, tag = 'output window, operand 0']
    %10 = vsyncpa [#allocation3], 0
    %s11 = scalar_lea.sflag [#allocation3], 1
    %12 = vsyncpa %s11, 0
    %13 = vsyncpa [#allocation4], 0
    %s14 = scalar_lea.sflag [#allocation4], 1
    %15 = vsyncpa %s14, 0
    loop: start=0, step=1, limit=4
    $region2: #{tpu_custom_call.1} parent=1 // loop_pre_header
      _
    $region3: #{tpu_custom_call.1} parent=1 // loop_header
      %s17 = sphi 0, %s21
      %p18 = scmp.ge.s32.totalorder %s17, 4
      %s27 = sphi 0, %s29
      %s30 = sphi 0, %s27
      %s31 = sphi 0, %s30
      %s47 = sphi 0, %s31
      %s51 = sphi 0, %s51
      %s53 = sphi 0, %s51
      %s54 = sphi 0, %s53
      %s68 = sphi 0, %s54
      %s72 = sphi 0, %s72
      %s74 = sphi 0, %s72
      %s75 = sphi 0, %s74
      %s89 = sphi 0, %s75
      %s93 = sphi 0, %s93
      %s95 = sphi 0, %s93
      %s96 = sphi 0, %s95
      %s110 = sphi 0, %s96
      %s114 = sphi 0, %s114
      %s116 = sphi 0, %s114
      %s117 = sphi 0, %s116
      %s131 = sphi 0, %s117
      %s137 = sphi 0, %s139
      %s140 = sphi 0, %s137
      %s141 = sphi 0, %s140
      %s157 = sphi 0, %s141
    $region4: #{tpu_custom_call.1} parent=1 // loop_header_branch
      %20 = sbr.rel (%p18) target = $region8
    $region5: #{tpu_custom_call.1} parent=1 // loop_body
      %s22 = ssub.s32 %s17, 1
      %s23 = ssub.s32 %s17, 2
      %s24 = sadd.s32 %s17, 1
      %s25 = ssub.s32 %s17, %s24
      %p26 = scmp.eq.s32.totalorder %s25, 0
      %s28 = sadd.s32 %s27, 1
      %s29 = scalar_select %p26, %s27, %s28
      %p32 = pneg %p26
      %p33 = scmp.eq.s32.totalorder %s17, 1
      %p34 = por %p32, %p33
      %p35 = scmp.ne.s32.totalorder %s27, %s30
      %p36 = scmp.eq.s32.totalorder %s17, 0
      %p37 = por %p35, %p36
      %p38 = scmp.ne.s32.totalorder %s27, %s30
      %p39 = scmp.eq.s32.totalorder %s22, 1
      %p40 = por %p38, %p39
      %p41 = scmp.ne.s32.totalorder %s30, %s31
      %p42 = scmp.eq.s32.totalorder %s22, 0
      %p43 = por %p41, %p42
      %p44 = scmp.ne.s32.totalorder %s30, %s31
      %p45 = scmp.eq.s32.totalorder %s23, 1
      %p46 = por %p44, %p45
      %p48 = scmp.ne.s32.totalorder %s31, %s47
      %p49 = scmp.eq.s32.totalorder %s23, 0
      %p50 = por %p48, %p49
      %s52 = sadd.s32 %s51, 1
      %p55 = scmp.eq.s32.totalorder %s17, 1
      %p56 = scmp.ne.s32.totalorder %s51, %s53
      %p57 = scmp.eq.s32.totalorder %s17, 0
      %p58 = por %p56, %p57
      %p59 = scmp.ne.s32.totalorder %s51, %s53
      %p60 = scmp.eq.s32.totalorder %s22, 1
      %p61 = por %p59, %p60
      %p62 = scmp.ne.s32.totalorder %s53, %s54
      %p63 = scmp.eq.s32.totalorder %s22, 0
      %p64 = por %p62, %p63
      %p65 = scmp.ne.s32.totalorder %s53, %s54
      %p66 = scmp.eq.s32.totalorder %s23, 1
      %p67 = por %p65, %p66
      %p69 = scmp.ne.s32.totalorder %s54, %s68
      %p70 = scmp.eq.s32.totalorder %s23, 0
      %p71 = por %p69, %p70
      %s73 = sadd.s32 %s72, 1
      %p76 = scmp.eq.s32.totalorder %s17, 1
      %p77 = scmp.ne.s32.totalorder %s72, %s74
      %p78 = scmp.eq.s32.totalorder %s17, 0
      %p79 = por %p77, %p78
      %p80 = scmp.ne.s32.totalorder %s72, %s74
      %p81 = scmp.eq.s32.totalorder %s22, 1
      %p82 = por %p80, %p81
      %p83 = scmp.ne.s32.totalorder %s74, %s75
      %p84 = scmp.eq.s32.totalorder %s22, 0
      %p85 = por %p83, %p84
      %p86 = scmp.ne.s32.totalorder %s74, %s75
      %p87 = scmp.eq.s32.totalorder %s23, 1
      %p88 = por %p86, %p87
      %p90 = scmp.ne.s32.totalorder %s75, %s89
      %p91 = scmp.eq.s32.totalorder %s23, 0
      %p92 = por %p90, %p91
      %s94 = sadd.s32 %s93, 1
      %p97 = scmp.eq.s32.totalorder %s17, 1
      %p98 = scmp.ne.s32.totalorder %s93, %s95
      %p99 = scmp.eq.s32.totalorder %s17, 0
      %p100 = por %p98, %p99
      %p101 = scmp.ne.s32.totalorder %s93, %s95
      %p102 = scmp.eq.s32.totalorder %s22, 1
      %p103 = por %p101, %p102
      %p104 = scmp.ne.s32.totalorder %s95, %s96
      %p105 = scmp.eq.s32.totalorder %s22, 0
      %p106 = por %p104, %p105
      %p107 = scmp.ne.s32.totalorder %s95, %s96
      %p108 = scmp.eq.s32.totalorder %s23, 1
      %p109 = por %p107, %p108
      %p111 = scmp.ne.s32.totalorder %s96, %s110
      %p112 = scmp.eq.s32.totalorder %s23, 0
      %p113 = por %p111, %p112
      %s115 = sadd.s32 %s114, 1
      %p118 = scmp.eq.s32.totalorder %s17, 1
      %p119 = scmp.ne.s32.totalorder %s114, %s116
      %p120 = scmp.eq.s32.totalorder %s17, 0
      %p121 = por %p119, %p120
      %p122 = scmp.ne.s32.totalorder %s114, %s116
      %p123 = scmp.eq.s32.totalorder %s22, 1
      %p124 = por %p122, %p123
      %p125 = scmp.ne.s32.totalorder %s116, %s117
      %p126 = scmp.eq.s32.totalorder %s22, 0
      %p127 = por %p125, %p126
      %p128 = scmp.ne.s32.totalorder %s116, %s117
      %p129 = scmp.eq.s32.totalorder %s23, 1
      %p130 = por %p128, %p129
      %p132 = scmp.ne.s32.totalorder %s117, %s131
      %p133 = scmp.eq.s32.totalorder %s23, 0
      %p134 = por %p132, %p133
      %s135 = ssub.s32 %s17, %s24
      %p136 = scmp.eq.s32.totalorder %s135, 0
      %s138 = sadd.s32 %s137, 1
      %s139 = scalar_select %p136, %s137, %s138
      %p142 = pneg %p136
      %p143 = scmp.eq.s32.totalorder %s17, 1
      %p144 = por %p142, %p143
      %p145 = scmp.ne.s32.totalorder %s137, %s140
      %p146 = scmp.eq.s32.totalorder %s17, 0
      %p147 = por %p145, %p146
      %p148 = scmp.ne.s32.totalorder %s137, %s140
      %p149 = scmp.eq.s32.totalorder %s22, 1
      %p150 = por %p148, %p149
      %p151 = scmp.ne.s32.totalorder %s140, %s141
      %p152 = scmp.eq.s32.totalorder %s22, 0
      %p153 = por %p151, %p152
      %p154 = scmp.ne.s32.totalorder %s140, %s141
      %p155 = scmp.eq.s32.totalorder %s23, 1
      %p156 = por %p154, %p155
      %p158 = scmp.ne.s32.totalorder %s141, %s157
      %p159 = scmp.eq.s32.totalorder %s23, 0
      %p160 = por %p158, %p159
      %p161 = scmp.le.s32.totalorder 1, %s17
      %p162 = scmp.lt.s32.totalorder %s17, 3
      %p163 = pnand %p161, %p162
      %p164 = pneg %p163
      // Predicated region
      $region9: #{tpu_custom_call.1} parent=5 // pred_check
        _
      $region10: #{tpu_custom_call.1} parent=5 // pred_check_branch
        %166 = sbr.rel (%p163) target = $region12
      $region11: #{tpu_custom_call.1} parent=5 // pred_region
        %s167 = ssub.s32 %s17, 1
        // Predicated region
        $region13: #{tpu_custom_call.1} parent=11 // pred_check
          %p168 = pneg %p64
        $region14: #{tpu_custom_call.1} parent=11 // pred_check_branch
          %170 = sbr.rel (%p168) target = $region16
        $region15: #{tpu_custom_call.1} parent=11 // pred_region
          _
        $region16: #{tpu_custom_call.1} parent=11 // pred_fallthru
          _
        // Predicated region
        $region17: #{tpu_custom_call.1} parent=11 // pred_check
          %p171 = pneg %p85
        $region18: #{tpu_custom_call.1} parent=11 // pred_check_branch
          %173 = sbr.rel (%p171) target = $region20
        $region19: #{tpu_custom_call.1} parent=11 // pred_region
          _
        $region20: #{tpu_custom_call.1} parent=11 // pred_fallthru
          _
        // Predicated region
        $region21: #{tpu_custom_call.1} parent=11 // pred_check
          %p174 = pneg %p106
        $region22: #{tpu_custom_call.1} parent=11 // pred_check_branch
          %176 = sbr.rel (%p174) target = $region24
        $region23: #{tpu_custom_call.1} parent=11 // pred_region
          _
        $region24: #{tpu_custom_call.1} parent=11 // pred_fallthru
          _
        // Predicated region
        $region25: #{tpu_custom_call.1} parent=11 // pred_check
          %p177 = pneg %p127
        $region26: #{tpu_custom_call.1} parent=11 // pred_check_branch
          %179 = sbr.rel (%p177) target = $region28
        $region27: #{tpu_custom_call.1} parent=11 // pred_region
          _
        $region28: #{tpu_custom_call.1} parent=11 // pred_fallthru
          _
      $region12: #{tpu_custom_call.1} parent=5 // pred_fallthru
        _
      %p180 = scmp.lt.s32.totalorder %s17, 2
      // Predicated region
      $region29: #{tpu_custom_call.1} parent=5 // pred_check
        %p181 = pneg %p180
      $region30: #{tpu_custom_call.1} parent=5 // pred_check_branch
        %183 = sbr.rel (%p181) target = $region32
      $region31: #{tpu_custom_call.1} parent=5 // pred_region
        // Predicated region
        $region33: #{tpu_custom_call.1} parent=31 // pred_check
          %p184 = pneg %p37
        $region34: #{tpu_custom_call.1} parent=31 // pred_check_branch
          %186 = sbr.rel (%p184) target = $region36
        $region35: #{tpu_custom_call.1} parent=31 // pred_region
          %s187 = sand.u32 %s27, 1
          %s188 = scalar_lea.sflag [#allocation3], %s187
          %s189 = sand.u32 %s27, 1
          %s190 = smul.addr %s189, 64
          %s191 = scalar_lea.vmem [#allocation2], %s190
          %s192 = smul.u32 4, %s17
          %s194 = ssub.s32 1024, 1024
          %195 = vsyncadd %s188, %s194
          %s196 = smul.addr %s192, 128
          %s197 = scalar_lea.hbm %s0, %s196
          %s198 = sshll.u32 %s191, 4
          %s199 = int_to_ptr.vmem [resolvable:$true] %s198
          %204 = dma.hbm_to_vmem [thread:$0]  %s197, 1024, %s199, %s188, 1024, 512, 32
        $region36: #{tpu_custom_call.1} parent=31 // pred_fallthru
          _
      $region32: #{tpu_custom_call.1} parent=5 // pred_fallthru
        _
      %p205 = scmp.le.s32.totalorder 1, %s17
      %p206 = scmp.lt.s32.totalorder %s17, 3
      %p207 = pnand %p205, %p206
      %p208 = pneg %p207
      // Predicated region
      $region37: #{tpu_custom_call.1} parent=5 // pred_check
        _
      $region38: #{tpu_custom_call.1} parent=5 // pred_check_branch
        %210 = sbr.rel (%p207) target = $region40
      $region39: #{tpu_custom_call.1} parent=5 // pred_region
        %s211 = ssub.s32 %s17, 1
        %s212 = sand.u32 %s30, 1
        %s213 = scalar_lea.sflag [#allocation3], %s212
        %s214 = sand.u32 %s30, 1
        %s215 = smul.addr %s214, 64
        %s216 = scalar_lea.vmem [#allocation2], %s215
        // Predicated region
        $region41: #{tpu_custom_call.1} parent=39 // pred_check
          %p217 = pneg %p43
        $region42: #{tpu_custom_call.1} parent=39 // pred_check_branch
          %219 = sbr.rel (%p217) target = $region44
        $region43: #{tpu_custom_call.1} parent=39 // pred_region
          %220 = dma.done %s213, 1024
        $region44: #{tpu_custom_call.1} parent=39 // pred_fallthru
          _
        %s221 = sand.u32 %s30, 1
        %s222 = scalar_lea.sflag [#allocation3], %s221
        %s223 = sand.u32 %s30, 1
        %s224 = smul.addr %s223, 64
        %s225 = scalar_lea.vmem [#allocation2], %s224
        %p226 = pneg %p43
        %p227 = pneg %p40
        %p228 = pneg %p64
        %p229 = pneg %p61
        %p230 = pneg %p85
        %p231 = pneg %p82
        %p232 = pneg %p106
        %p233 = pneg %p103
        %p234 = pneg %p127
        %p235 = pneg %p124
        %p236 = pneg %p153
        %p237 = pneg %p150
        %s238 = sand.u32 %s140, 1
        %s239 = scalar_lea.sflag [#allocation4], %s238
        %s240 = sand.u32 %s140, 1
        %s241 = smul.addr %s240, 64
        %s242 = scalar_lea.vmem [#allocation5], %s241
        %s243 = smul.u32 4, %s22
        %s244 = smul.u32 4, %s22
        %v245 = vld [vmem:[%s1] sm:$0xff]
        %v246 = vld [vmem:[%s1 + $0x8] sm:$0xff]
        %v247 = vld [vmem:[%s1 + $0x10] sm:$0xff]
        %v248 = vld [vmem:[%s1 + $0x18] sm:$0xff]
        %v249 = vld [vmem:[%s3] sm:$0xff]
        %v250 = vld [vmem:[%s2] sm:$0xff]
        %v251 = vld [vmem:[%s2 + $0x8] sm:$0xff]
        %v252 = vld [vmem:[%s2 + $0x10] sm:$0xff]
        %v253 = vld [vmem:[%s2 + $0x18] sm:$0xff]
        %v254 = vld [vmem:[%s4] sm:$0xff]
        %v255 = vld [vmem:[%s216] sm:$0xff]
        %v256 = vld [vmem:[%s216 + $0x8] sm:$0xff]
        %v257 = vld [vmem:[%s216 + $0x10] sm:$0xff]
        %v258 = vld [vmem:[%s216 + $0x18] sm:$0xff]
        %vm259 = vcmask 64512
        %v261 = vsel %vm259, %v245, 0
        %v264 = vsel %vm259, %v246, 0
        %v267 = vsel %vm259, %v247, 0
        %v270 = vsel %vm259, %v248, 0
        %272 = vmatprep.subr.mxu0 %v256
        %273 = vmatpush1.msra.mxu0 %v255
        %274 = vmatprep.subr.mxu0 0.0
        %275 = vmatpush1.msra.mxu0 0.0
        %276 = vmatprep.subr.mxu0 0.0
        %277 = vmatpush1.msra.mxu0 0.0
        %278 = vmatprep.subr.mxu0 0.0
        %279 = vmatpush1.msra.mxu0 0.0
        %280 = vmatprep.subr.mxu0 0.0
        %281 = vmatpush1.msra.mxu0 0.0
        %282 = vmatprep.subr.mxu0 0.0
        %283 = vmatpush1.msra.mxu0 0.0
        %284 = vmatprep.subr.mxu0 0.0
        %285 = vmatpush1.msra.mxu0 0.0
        %286 = vmatprep.subr.mxu0 0.0
        %287 = vmatpush1.msra.mxu0 0.0
        %288 = vmatprep.subr.mxu0 0.0
        %289 = vmatpush1.msra.mxu0 0.0
        %290 = vmatprep.subr.mxu0 0.0
        %291 = vmatpush1.msra.mxu0 0.0
        %292 = vmatprep.subr.mxu0 0.0
        %293 = vmatpush1.msra.mxu0 0.0
        %294 = vmatprep.subr.mxu0 0.0
        %295 = vmatpush1.msra.mxu0 0.0
        %296 = vmatprep.subr.mxu0 0.0
        %297 = vmatpush1.msra.mxu0 0.0
        %298 = vmatprep.subr.mxu0 0.0
        %299 = vmatpush1.msra.mxu0 0.0
        %300 = vmatprep.subr.mxu0 0.0
        %301 = vmatpush1.msra.mxu0 0.0
        %302 = vmatprep.subr.mxu0 0.0
        %303 = vmatpush1.msra.mxu0 0.0
        %304 = vmatprep.subr.mxu0 0.0
        %305 = vmatpush1.msra.mxu0 0.0
        %306 = vmatprep.subr.mxu0 0.0
        %307 = vmatpush1.msra.mxu0 0.0
        %308 = vmatprep.subr.mxu0 0.0
        %309 = vmatpush1.msra.mxu0 0.0
        %310 = vmatprep.subr.mxu0 0.0
        %311 = vmatpush1.msra.mxu0 0.0
        %312 = vmatprep.subr.mxu0 0.0
        %313 = vmatpush1.msra.mxu0 0.0
        %314 = vmatprep.subr.mxu0 0.0
        %315 = vmatpush1.msra.mxu0 0.0
        %316 = vmatprep.subr.mxu0 0.0
        %317 = vmatpush1.msra.mxu0 0.0
        %318 = vmatprep.subr.mxu0 0.0
        %319 = vmatpush1.msra.mxu0 0.0
        %320 = vmatprep.subr.mxu0 0.0
        %321 = vmatpush1.msra.mxu0 0.0
        %322 = vmatprep.subr.mxu0 0.0
        %323 = vmatpush1.msra.mxu0 0.0
        %324 = vmatprep.subr.mxu0 0.0
        %325 = vmatpush1.msra.mxu0 0.0
        %326 = vmatprep.subr.mxu0 0.0
        %327 = vmatpush1.msra.mxu0 0.0
        %328 = vmatprep.subr.mxu0 0.0
        %329 = vmatpush1.msra.mxu0 0.0
        %330 = vmatprep.subr.mxu0 0.0
        %331 = vmatpush1.msra.mxu0 0.0
        %332 = vmatprep.subr.mxu0 0.0
        %333 = vmatpush1.msra.mxu0 0.0
        %334 = vmatprep.subr.mxu0 0.0
        %335 = vmatpush1.msra.mxu0 0.0
        %336 = vmatprep.mubr.f32.mxu0 0.0
        %337 = vmatmul.mubr.f32.gmra.mrb[0].mxu0 %v261
        %v338 = vpop.f32.mrb[0].mxu0
        %v339 = vadd.f32 0.0, %v338
        %v340 = vpop.f32.mrb[0].mxu0
        %v341 = vadd.f32 0.0, %v340
        %342 = vmatprep.mubr.f32.mxu0 0.0
        %343 = vmatmul.mubr.f32.gmra.mrb[0].mxu0 %v264
        %v344 = vpop.f32.mrb[0].mxu0
        %v345 = vadd.f32 0.0, %v344
        %v346 = vpop.f32.mrb[0].mxu0
        %v347 = vadd.f32 0.0, %v346
        %348 = vmatprep.mubr.f32.mxu0 0.0
        %349 = vmatmul.mubr.f32.gmra.mrb[0].mxu0 %v267
        %v350 = vpop.f32.mrb[0].mxu0
        %v351 = vadd.f32 0.0, %v350
        %v352 = vpop.f32.mrb[0].mxu0
        %v353 = vadd.f32 0.0, %v352
        %354 = vmatprep.mubr.f32.mxu0 0.0
        %355 = vmatmul.mubr.f32.gmra.mrb[0].mxu0 %v270
        %v356 = vpop.f32.mrb[0].mxu0
        %v357 = vadd.f32 0.0, %v356
        %v358 = vpop.f32.mrb[0].mxu0
        %v359 = vadd.f32 0.0, %v358
        %360 = vdwg.mxu0
        %361 = vmatprep.subr.mxu0 %v258
        %362 = vmatpush1.msra.mxu0 %v257
        %363 = vmatprep.subr.mxu0 0.0
        %364 = vmatpush1.msra.mxu0 0.0
        %365 = vmatprep.subr.mxu0 0.0
        %366 = vmatpush1.msra.mxu0 0.0
        %367 = vmatprep.subr.mxu0 0.0
        %368 = vmatpush1.msra.mxu0 0.0
        %369 = vmatprep.subr.mxu0 0.0
        %370 = vmatpush1.msra.mxu0 0.0
        %371 = vmatprep.subr.mxu0 0.0
        %372 = vmatpush1.msra.mxu0 0.0
        %373 = vmatprep.subr.mxu0 0.0
        %374 = vmatpush1.msra.mxu0 0.0
        %375 = vmatprep.subr.mxu0 0.0
        %376 = vmatpush1.msra.mxu0 0.0
        %377 = vmatprep.subr.mxu0 0.0
        %378 = vmatpush1.msra.mxu0 0.0
        %379 = vmatprep.subr.mxu0 0.0
        %380 = vmatpush1.msra.mxu0 0.0
        %381 = vmatprep.subr.mxu0 0.0
        %382 = vmatpush1.msra.mxu0 0.0
        %383 = vmatprep.subr.mxu0 0.0
        %384 = vmatpush1.msra.mxu0 0.0
        %385 = vmatprep.subr.mxu0 0.0
        %386 = vmatpush1.msra.mxu0 0.0
        %387 = vmatprep.subr.mxu0 0.0
        %388 = vmatpush1.msra.mxu0 0.0
        %389 = vmatprep.subr.mxu0 0.0
        %390 = vmatpush1.msra.mxu0 0.0
        %391 = vmatprep.subr.mxu0 0.0
        %392 = vmatpush1.msra.mxu0 0.0
        %393 = vmatprep.subr.mxu0 0.0
        %394 = vmatpush1.msra.mxu0 0.0
        %395 = vmatprep.subr.mxu0 0.0
        %396 = vmatpush1.msra.mxu0 0.0
        %397 = vmatprep.subr.mxu0 0.0
        %398 = vmatpush1.msra.mxu0 0.0
        %399 = vmatprep.subr.mxu0 0.0
        %400 = vmatpush1.msra.mxu0 0.0
        %401 = vmatprep.subr.mxu0 0.0
        %402 = vmatpush1.msra.mxu0 0.0
        %403 = vmatprep.subr.mxu0 0.0
        %404 = vmatpush1.msra.mxu0 0.0
        %405 = vmatprep.subr.mxu0 0.0
        %406 = vmatpush1.msra.mxu0 0.0
        %407 = vmatprep.subr.mxu0 0.0
        %408 = vmatpush1.msra.mxu0 0.0
        %409 = vmatprep.subr.mxu0 0.0
        %410 = vmatpush1.msra.mxu0 0.0
        %411 = vmatprep.subr.mxu0 0.0
        %412 = vmatpush1.msra.mxu0 0.0
        %413 = vmatprep.subr.mxu0 0.0
        %414 = vmatpush1.msra.mxu0 0.0
        %415 = vmatprep.subr.mxu0 0.0
        %416 = vmatpush1.msra.mxu0 0.0
        %417 = vmatprep.subr.mxu0 0.0
        %418 = vmatpush1.msra.mxu0 0.0
        %419 = vmatprep.subr.mxu0 0.0
        %420 = vmatpush1.msra.mxu0 0.0
        %421 = vmatprep.subr.mxu0 0.0
        %422 = vmatpush1.msra.mxu0 0.0
        %423 = vmatprep.subr.mxu0 0.0
        %424 = vmatpush1.msra.mxu0 0.0
        %425 = vmatprep.mubr.f32.mxu0 0.0
        %426 = vmatmul.mubr.f32.gmra.mrb[0].mxu0 %v261
        %v427 = vpop.f32.mrb[0].mxu0
        %v428 = vadd.f32 0.0, %v427
        %v429 = vpop.f32.mrb[0].mxu0
        %v430 = vadd.f32 0.0, %v429
        %431 = vmatprep.mubr.f32.mxu0 0.0
        %432 = vmatmul.mubr.f32.gmra.mrb[0].mxu0 %v264
        %v433 = vpop.f32.mrb[0].mxu0
        %v434 = vadd.f32 0.0, %v433
        %v435 = vpop.f32.mrb[0].mxu0
        %v436 = vadd.f32 0.0, %v435
        %437 = vmatprep.mubr.f32.mxu0 0.0
        %438 = vmatmul.mubr.f32.gmra.mrb[0].mxu0 %v267
        %v439 = vpop.f32.mrb[0].mxu0
        %v440 = vadd.f32 0.0, %v439
        %v441 = vpop.f32.mrb[0].mxu0
        %v442 = vadd.f32 0.0, %v441
        %443 = vmatprep.mubr.f32.mxu0 0.0
        %444 = vmatmul.mubr.f32.gmra.mrb[0].mxu0 %v270
        %v445 = vpop.f32.mrb[0].mxu0
        %v446 = vadd.f32 0.0, %v445
        %v447 = vpop.f32.mrb[0].mxu0
        %v448 = vadd.f32 0.0, %v447
        %449 = vdwg.mxu0
        %451 = vset.pattern.permute.xlu0 2
        %452 = vperm.xlu0 %451, %v250
        %v453 = vpop.permute.xlu0 %452
        %456 = vset.pattern.permute.xlu0 2
        %457 = vperm.xlu0 %456, %v251
        %v458 = vpop.permute.xlu0 %457
        %461 = vset.pattern.permute.xlu0 2
        %462 = vperm.xlu0 %461, %v252
        %v463 = vpop.permute.xlu0 %462
        %466 = vset.pattern.permute.xlu0 2
        %467 = vperm.xlu0 %466, %v253
        %v468 = vpop.permute.xlu0 %467
        %v470 = vmul.f32 %v453, %v339
        %v471 = vmul.f32 %v453, %v341
        %v472 = vmul.f32 %v453, %v428
        %v473 = vmul.f32 %v453, %v430
        %v474 = vmul.f32 %v458, %v345
        %v475 = vmul.f32 %v458, %v347
        %v476 = vmul.f32 %v458, %v434
        %v477 = vmul.f32 %v458, %v436
        %v478 = vmul.f32 %v463, %v351
        %v479 = vmul.f32 %v463, %v353
        %v480 = vmul.f32 %v463, %v440
        %v481 = vmul.f32 %v463, %v442
        %v482 = vmul.f32 %v468, %v357
        %v483 = vmul.f32 %v468, %v359
        %v484 = vmul.f32 %v468, %v446
        %v485 = vmul.f32 %v468, %v448
        %486 = vset.pattern.permute.xlu0 1
        %487 = vperm.xlu0 %486, %v250
        %v488 = vpop.permute.xlu0 %487
        %490 = vset.pattern.permute.xlu0 1
        %491 = vperm.xlu0 %490, %v251
        %v492 = vpop.permute.xlu0 %491
        %494 = vset.pattern.permute.xlu0 1
        %495 = vperm.xlu0 %494, %v252
        %v496 = vpop.permute.xlu0 %495
        %498 = vset.pattern.permute.xlu0 1
        %499 = vperm.xlu0 %498, %v253
        %v500 = vpop.permute.xlu0 %499
        %v502 = vadd.f32 %v470, %v488
        %v503 = vadd.f32 %v471, %v488
        %v504 = vadd.f32 %v472, %v488
        %v505 = vadd.f32 %v473, %v488
        %v506 = vadd.f32 %v474, %v492
        %v507 = vadd.f32 %v475, %v492
        %v508 = vadd.f32 %v476, %v492
        %v509 = vadd.f32 %v477, %v492
        %v510 = vadd.f32 %v478, %v496
        %v511 = vadd.f32 %v479, %v496
        %v512 = vadd.f32 %v480, %v496
        %v513 = vadd.f32 %v481, %v496
        %v514 = vadd.f32 %v482, %v500
        %v515 = vadd.f32 %v483, %v500
        %v516 = vadd.f32 %v484, %v500
        %v517 = vadd.f32 %v485, %v500
        %v518 = vmul.f32 %v502, %v339
        %v519 = vmul.f32 %v503, %v341
        %v520 = vmul.f32 %v504, %v428
        %v521 = vmul.f32 %v505, %v430
        %v522 = vmul.f32 %v506, %v345
        %v523 = vmul.f32 %v507, %v347
        %v524 = vmul.f32 %v508, %v434
        %v525 = vmul.f32 %v509, %v436
        %v526 = vmul.f32 %v510, %v351
        %v527 = vmul.f32 %v511, %v353
        %v528 = vmul.f32 %v512, %v440
        %v529 = vmul.f32 %v513, %v442
        %v530 = vmul.f32 %v514, %v357
        %v531 = vmul.f32 %v515, %v359
        %v532 = vmul.f32 %v516, %v446
        %v533 = vmul.f32 %v517, %v448
        %534 = vset.pattern.permute.xlu0 0
        %535 = vperm.xlu0 %534, %v250
        %v536 = vpop.permute.xlu0 %535
        %538 = vset.pattern.permute.xlu0 0
        %539 = vperm.xlu0 %538, %v251
        %v540 = vpop.permute.xlu0 %539
        %542 = vset.pattern.permute.xlu0 0
        %543 = vperm.xlu0 %542, %v252
        %v544 = vpop.permute.xlu0 %543
        %546 = vset.pattern.permute.xlu0 0
        %547 = vperm.xlu0 %546, %v253
        %v548 = vpop.permute.xlu0 %547
        %v550 = vadd.f32 %v518, %v536
        %v551 = vadd.f32 %v519, %v536
        %v552 = vadd.f32 %v520, %v536
        %v553 = vadd.f32 %v521, %v536
        %v554 = vadd.f32 %v522, %v540
        %v555 = vadd.f32 %v523, %v540
        %v556 = vadd.f32 %v524, %v540
        %v557 = vadd.f32 %v525, %v540
        %v558 = vadd.f32 %v526, %v544
        %v559 = vadd.f32 %v527, %v544
        %v560 = vadd.f32 %v528, %v544
        %v561 = vadd.f32 %v529, %v544
        %v562 = vadd.f32 %v530, %v548
        %v563 = vadd.f32 %v531, %v548
        %v564 = vadd.f32 %v532, %v548
        %v565 = vadd.f32 %v533, %v548
        %567 = vset.pattern.permute.xlu0 0
        %568 = vperm.xlu0 %567, %v254
        %v569 = vpop.permute.xlu0 %568
        %vm571 = vcmask 261120
        %v573 = vsel %vm571, %v249, 0
        %575 = vmatprep.subr.mxu0 %v551
        %576 = vmatpush1.msra.mxu0 %v550
        %577 = vmatprep.subr.mxu0 %v555
        %578 = vmatpush1.msra.mxu0 %v554
        %579 = vmatprep.subr.mxu0 %v559
        %580 = vmatpush1.msra.mxu0 %v558
        %581 = vmatprep.subr.mxu0 %v563
        %582 = vmatpush1.msra.mxu0 %v562
        %583 = vmatprep.subr.mxu0 0.0
        %584 = vmatpush1.msra.mxu0 0.0
        %585 = vmatprep.subr.mxu0 0.0
        %586 = vmatpush1.msra.mxu0 0.0
        %587 = vmatprep.subr.mxu0 0.0
        %588 = vmatpush1.msra.mxu0 0.0
        %589 = vmatprep.subr.mxu0 0.0
        %590 = vmatpush1.msra.mxu0 0.0
        %591 = vmatprep.subr.mxu0 0.0
        %592 = vmatpush1.msra.mxu0 0.0
        %593 = vmatprep.subr.mxu0 0.0
        %594 = vmatpush1.msra.mxu0 0.0
        %595 = vmatprep.subr.mxu0 0.0
        %596 = vmatpush1.msra.mxu0 0.0
        %597 = vmatprep.subr.mxu0 0.0
        %598 = vmatpush1.msra.mxu0 0.0
        %599 = vmatprep.subr.mxu0 0.0
        %600 = vmatpush1.msra.mxu0 0.0
        %601 = vmatprep.subr.mxu0 0.0
        %602 = vmatpush1.msra.mxu0 0.0
        %603 = vmatprep.subr.mxu0 0.0
        %604 = vmatpush1.msra.mxu0 0.0
        %605 = vmatprep.subr.mxu0 0.0
        %606 = vmatpush1.msra.mxu0 0.0
        %607 = vmatprep.subr.mxu0 0.0
        %608 = vmatpush1.msra.mxu0 0.0
        %609 = vmatprep.subr.mxu0 0.0
        %610 = vmatpush1.msra.mxu0 0.0
        %611 = vmatprep.subr.mxu0 0.0
        %612 = vmatpush1.msra.mxu0 0.0
        %613 = vmatprep.subr.mxu0 0.0
        %614 = vmatpush1.msra.mxu0 0.0
        %615 = vmatprep.subr.mxu0 0.0
        %616 = vmatpush1.msra.mxu0 0.0
        %617 = vmatprep.subr.mxu0 0.0
        %618 = vmatpush1.msra.mxu0 0.0
        %619 = vmatprep.subr.mxu0 0.0
        %620 = vmatpush1.msra.mxu0 0.0
        %621 = vmatprep.subr.mxu0 0.0
        %622 = vmatpush1.msra.mxu0 0.0
        %623 = vmatprep.subr.mxu0 0.0
        %624 = vmatpush1.msra.mxu0 0.0
        %625 = vmatprep.subr.mxu0 0.0
        %626 = vmatpush1.msra.mxu0 0.0
        %627 = vmatprep.subr.mxu0 0.0
        %628 = vmatpush1.msra.mxu0 0.0
        %629 = vmatprep.subr.mxu0 0.0
        %630 = vmatpush1.msra.mxu0 0.0
        %631 = vmatprep.subr.mxu0 0.0
        %632 = vmatpush1.msra.mxu0 0.0
        %633 = vmatprep.subr.mxu0 0.0
        %634 = vmatpush1.msra.mxu0 0.0
        %635 = vmatprep.subr.mxu0 0.0
        %636 = vmatpush1.msra.mxu0 0.0
        %637 = vmatprep.subr.mxu0 0.0
        %638 = vmatpush1.msra.mxu0 0.0
        %639 = vmatprep.mubr.f32.mxu0 0.0
        %640 = vmatmul.mubr.f32.gmra.mrb[0].mxu0 %v573
        %v641 = vpop.f32.mrb[0].mxu0
        %v642 = vadd.f32 %v569, %v641
        %v643 = vpop.f32.mrb[0].mxu0
        %v644 = vadd.f32 %v569, %v643
        %645 = vdwg.mxu0
        %646 = vmatprep.subr.mxu0 %v553
        %647 = vmatpush1.msra.mxu0 %v552
        %648 = vmatprep.subr.mxu0 %v557
        %649 = vmatpush1.msra.mxu0 %v556
        %650 = vmatprep.subr.mxu0 %v561
        %651 = vmatpush1.msra.mxu0 %v560
        %652 = vmatprep.subr.mxu0 %v565
        %653 = vmatpush1.msra.mxu0 %v564
        %654 = vmatprep.subr.mxu0 0.0
        %655 = vmatpush1.msra.mxu0 0.0
        %656 = vmatprep.subr.mxu0 0.0
        %657 = vmatpush1.msra.mxu0 0.0
        %658 = vmatprep.subr.mxu0 0.0
        %659 = vmatpush1.msra.mxu0 0.0
        %660 = vmatprep.subr.mxu0 0.0
        %661 = vmatpush1.msra.mxu0 0.0
        %662 = vmatprep.subr.mxu0 0.0
        %663 = vmatpush1.msra.mxu0 0.0
        %664 = vmatprep.subr.mxu0 0.0
        %665 = vmatpush1.msra.mxu0 0.0
        %666 = vmatprep.subr.mxu0 0.0
        %667 = vmatpush1.msra.mxu0 0.0
        %668 = vmatprep.subr.mxu0 0.0
        %669 = vmatpush1.msra.mxu0 0.0
        %670 = vmatprep.subr.mxu0 0.0
        %671 = vmatpush1.msra.mxu0 0.0
        %672 = vmatprep.subr.mxu0 0.0
        %673 = vmatpush1.msra.mxu0 0.0
        %674 = vmatprep.subr.mxu0 0.0
        %675 = vmatpush1.msra.mxu0 0.0
        %676 = vmatprep.subr.mxu0 0.0
        %677 = vmatpush1.msra.mxu0 0.0
        %678 = vmatprep.subr.mxu0 0.0
        %679 = vmatpush1.msra.mxu0 0.0
        %680 = vmatprep.subr.mxu0 0.0
        %681 = vmatpush1.msra.mxu0 0.0
        %682 = vmatprep.subr.mxu0 0.0
        %683 = vmatpush1.msra.mxu0 0.0
        %684 = vmatprep.subr.mxu0 0.0
        %685 = vmatpush1.msra.mxu0 0.0
        %686 = vmatprep.subr.mxu0 0.0
        %687 = vmatpush1.msra.mxu0 0.0
        %688 = vmatprep.subr.mxu0 0.0
        %689 = vmatpush1.msra.mxu0 0.0
        %690 = vmatprep.subr.mxu0 0.0
        %691 = vmatpush1.msra.mxu0 0.0
        %692 = vmatprep.subr.mxu0 0.0
        %693 = vmatpush1.msra.mxu0 0.0
        %694 = vmatprep.subr.mxu0 0.0
        %695 = vmatpush1.msra.mxu0 0.0
        %696 = vmatprep.subr.mxu0 0.0
        %697 = vmatpush1.msra.mxu0 0.0
        %698 = vmatprep.subr.mxu0 0.0
        %699 = vmatpush1.msra.mxu0 0.0
        %700 = vmatprep.subr.mxu0 0.0
        %701 = vmatpush1.msra.mxu0 0.0
        %702 = vmatprep.subr.mxu0 0.0
        %703 = vmatpush1.msra.mxu0 0.0
        %704 = vmatprep.subr.mxu0 0.0
        %705 = vmatpush1.msra.mxu0 0.0
        %706 = vmatprep.subr.mxu0 0.0
        %707 = vmatpush1.msra.mxu0 0.0
        %708 = vmatprep.subr.mxu0 0.0
        %709 = vmatpush1.msra.mxu0 0.0
        %710 = vmatprep.mubr.f32.mxu0 0.0
        %711 = vmatmul.mubr.f32.gmra.mrb[0].mxu0 %v573
        %v712 = vpop.f32.mrb[0].mxu0
        %v713 = vadd.f32 %v569, %v712
        %v714 = vpop.f32.mrb[0].mxu0
        %v715 = vadd.f32 %v569, %v714
        %716 = vdwg.mxu0
        %717 = vst [vmem:[%s242] sm:$0xff] %v642
        %718 = vst [vmem:[%s242 + $0x8] sm:$0xff] %v644
        %719 = vst [vmem:[%s242 + $0x10] sm:$0xff] %v713
        %720 = vst [vmem:[%s242 + $0x18] sm:$0xff] %v715
        %s721 = sadd.s32 0, 4
        %s722 = smul.addr %s721, 8
        %s723 = scalar_lea.vmem %s216, %s722 [#allocation2]
        %v724 = vld [vmem:[%s723] sm:$0xff]
        %v725 = vld [vmem:[%s723 + $0x8] sm:$0xff]
        %v726 = vld [vmem:[%s723 + $0x10] sm:$0xff]
        %v727 = vld [vmem:[%s723 + $0x18] sm:$0xff]
        %728 = vmatprep.subr.mxu0 %v725
        %729 = vmatpush1.msra.mxu0 %v724
        %730 = vmatprep.subr.mxu0 0.0
        %731 = vmatpush1.msra.mxu0 0.0
        %732 = vmatprep.subr.mxu0 0.0
        %733 = vmatpush1.msra.mxu0 0.0
        %734 = vmatprep.subr.mxu0 0.0
        %735 = vmatpush1.msra.mxu0 0.0
        %736 = vmatprep.subr.mxu0 0.0
        %737 = vmatpush1.msra.mxu0 0.0
        %738 = vmatprep.subr.mxu0 0.0
        %739 = vmatpush1.msra.mxu0 0.0
        %740 = vmatprep.subr.mxu0 0.0
        %741 = vmatpush1.msra.mxu0 0.0
        %742 = vmatprep.subr.mxu0 0.0
        %743 = vmatpush1.msra.mxu0 0.0
        %744 = vmatprep.subr.mxu0 0.0
        %745 = vmatpush1.msra.mxu0 0.0
        %746 = vmatprep.subr.mxu0 0.0
        %747 = vmatpush1.msra.mxu0 0.0
        %748 = vmatprep.subr.mxu0 0.0
        %749 = vmatpush1.msra.mxu0 0.0
        %750 = vmatprep.subr.mxu0 0.0
        %751 = vmatpush1.msra.mxu0 0.0
        %752 = vmatprep.subr.mxu0 0.0
        %753 = vmatpush1.msra.mxu0 0.0
        %754 = vmatprep.subr.mxu0 0.0
        %755 = vmatpush1.msra.mxu0 0.0
        %756 = vmatprep.subr.mxu0 0.0
        %757 = vmatpush1.msra.mxu0 0.0
        %758 = vmatprep.subr.mxu0 0.0
        %759 = vmatpush1.msra.mxu0 0.0
        %760 = vmatprep.subr.mxu0 0.0
        %761 = vmatpush1.msra.mxu0 0.0
        %762 = vmatprep.subr.mxu0 0.0
        %763 = vmatpush1.msra.mxu0 0.0
        %764 = vmatprep.subr.mxu0 0.0
        %765 = vmatpush1.msra.mxu0 0.0
        %766 = vmatprep.subr.mxu0 0.0
        %767 = vmatpush1.msra.mxu0 0.0
        %768 = vmatprep.subr.mxu0 0.0
        %769 = vmatpush1.msra.mxu0 0.0
        %770 = vmatprep.subr.mxu0 0.0
        %771 = vmatpush1.msra.mxu0 0.0
        %772 = vmatprep.subr.mxu0 0.0
        %773 = vmatpush1.msra.mxu0 0.0
        %774 = vmatprep.subr.mxu0 0.0
        %775 = vmatpush1.msra.mxu0 0.0
        %776 = vmatprep.subr.mxu0 0.0
        %777 = vmatpush1.msra.mxu0 0.0
        %778 = vmatprep.subr.mxu0 0.0
        %779 = vmatpush1.msra.mxu0 0.0
        %780 = vmatprep.subr.mxu0 0.0
        %781 = vmatpush1.msra.mxu0 0.0
        %782 = vmatprep.subr.mxu0 0.0
        %783 = vmatpush1.msra.mxu0 0.0
        %784 = vmatprep.subr.mxu0 0.0
        %785 = vmatpush1.msra.mxu0 0.0
        %786 = vmatprep.subr.mxu0 0.0
        %787 = vmatpush1.msra.mxu0 0.0
        %788 = vmatprep.subr.mxu0 0.0
        %789 = vmatpush1.msra.mxu0 0.0
        %790 = vmatprep.subr.mxu0 0.0
        %791 = vmatpush1.msra.mxu0 0.0
        %792 = vmatprep.mubr.f32.mxu0 0.0
        %793 = vmatmul.mubr.f32.gmra.mrb[0].mxu0 %v261
        %v794 = vpop.f32.mrb[0].mxu0
        %v795 = vadd.f32 0.0, %v794
        %v796 = vpop.f32.mrb[0].mxu0
        %v797 = vadd.f32 0.0, %v796
        %798 = vmatprep.mubr.f32.mxu0 0.0
        %799 = vmatmul.mubr.f32.gmra.mrb[0].mxu0 %v264
        %v800 = vpop.f32.mrb[0].mxu0
        %v801 = vadd.f32 0.0, %v800
        %v802 = vpop.f32.mrb[0].mxu0
        %v803 = vadd.f32 0.0, %v802
        %804 = vmatprep.mubr.f32.mxu0 0.0
        %805 = vmatmul.mubr.f32.gmra.mrb[0].mxu0 %v267
        %v806 = vpop.f32.mrb[0].mxu0
        %v807 = vadd.f32 0.0, %v806
        %v808 = vpop.f32.mrb[0].mxu0
        %v809 = vadd.f32 0.0, %v808
        %810 = vmatprep.mubr.f32.mxu0 0.0
        %811 = vmatmul.mubr.f32.gmra.mrb[0].mxu0 %v270
        %v812 = vpop.f32.mrb[0].mxu0
        %v813 = vadd.f32 0.0, %v812
        %v814 = vpop.f32.mrb[0].mxu0
        %v815 = vadd.f32 0.0, %v814
        %816 = vdwg.mxu0
        %817 = vmatprep.subr.mxu0 %v727
        %818 = vmatpush1.msra.mxu0 %v726
        %819 = vmatprep.subr.mxu0 0.0
        %820 = vmatpush1.msra.mxu0 0.0
        %821 = vmatprep.subr.mxu0 0.0
        %822 = vmatpush1.msra.mxu0 0.0
        %823 = vmatprep.subr.mxu0 0.0
        %824 = vmatpush1.msra.mxu0 0.0
        %825 = vmatprep.subr.mxu0 0.0
        %826 = vmatpush1.msra.mxu0 0.0
        %827 = vmatprep.subr.mxu0 0.0
        %828 = vmatpush1.msra.mxu0 0.0
        %829 = vmatprep.subr.mxu0 0.0
        %830 = vmatpush1.msra.mxu0 0.0
        %831 = vmatprep.subr.mxu0 0.0
        %832 = vmatpush1.msra.mxu0 0.0
        %833 = vmatprep.subr.mxu0 0.0
        %834 = vmatpush1.msra.mxu0 0.0
        %835 = vmatprep.subr.mxu0 0.0
        %836 = vmatpush1.msra.mxu0 0.0
        %837 = vmatprep.subr.mxu0 0.0
        %838 = vmatpush1.msra.mxu0 0.0
        %839 = vmatprep.subr.mxu0 0.0
        %840 = vmatpush1.msra.mxu0 0.0
        %841 = vmatprep.subr.mxu0 0.0
        %842 = vmatpush1.msra.mxu0 0.0
        %843 = vmatprep.subr.mxu0 0.0
        %844 = vmatpush1.msra.mxu0 0.0
        %845 = vmatprep.subr.mxu0 0.0
        %846 = vmatpush1.msra.mxu0 0.0
        %847 = vmatprep.subr.mxu0 0.0
        %848 = vmatpush1.msra.mxu0 0.0
        %849 = vmatprep.subr.mxu0 0.0
        %850 = vmatpush1.msra.mxu0 0.0
        %851 = vmatprep.subr.mxu0 0.0
        %852 = vmatpush1.msra.mxu0 0.0
        %853 = vmatprep.subr.mxu0 0.0
        %854 = vmatpush1.msra.mxu0 0.0
        %855 = vmatprep.subr.mxu0 0.0
        %856 = vmatpush1.msra.mxu0 0.0
        %857 = vmatprep.subr.mxu0 0.0
        %858 = vmatpush1.msra.mxu0 0.0
        %859 = vmatprep.subr.mxu0 0.0
        %860 = vmatpush1.msra.mxu0 0.0
        %861 = vmatprep.subr.mxu0 0.0
        %862 = vmatpush1.msra.mxu0 0.0
        %863 = vmatprep.subr.mxu0 0.0
        %864 = vmatpush1.msra.mxu0 0.0
        %865 = vmatprep.subr.mxu0 0.0
        %866 = vmatpush1.msra.mxu0 0.0
        %867 = vmatprep.subr.mxu0 0.0
        %868 = vmatpush1.msra.mxu0 0.0
        %869 = vmatprep.subr.mxu0 0.0
        %870 = vmatpush1.msra.mxu0 0.0
        %871 = vmatprep.subr.mxu0 0.0
        %872 = vmatpush1.msra.mxu0 0.0
        %873 = vmatprep.subr.mxu0 0.0
        %874 = vmatpush1.msra.mxu0 0.0
        %875 = vmatprep.subr.mxu0 0.0
        %876 = vmatpush1.msra.mxu0 0.0
        %877 = vmatprep.subr.mxu0 0.0
        %878 = vmatpush1.msra.mxu0 0.0
        %879 = vmatprep.subr.mxu0 0.0
        %880 = vmatpush1.msra.mxu0 0.0
        %881 = vmatprep.mubr.f32.mxu0 0.0
        %882 = vmatmul.mubr.f32.gmra.mrb[0].mxu0 %v261
        %v883 = vpop.f32.mrb[0].mxu0
        %v884 = vadd.f32 0.0, %v883
        %v885 = vpop.f32.mrb[0].mxu0
        %v886 = vadd.f32 0.0, %v885
        %887 = vmatprep.mubr.f32.mxu0 0.0
        %888 = vmatmul.mubr.f32.gmra.mrb[0].mxu0 %v264
        %v889 = vpop.f32.mrb[0].mxu0
        %v890 = vadd.f32 0.0, %v889
        %v891 = vpop.f32.mrb[0].mxu0
        %v892 = vadd.f32 0.0, %v891
        %893 = vmatprep.mubr.f32.mxu0 0.0
        %894 = vmatmul.mubr.f32.gmra.mrb[0].mxu0 %v267
        %v895 = vpop.f32.mrb[0].mxu0
        %v896 = vadd.f32 0.0, %v895
        %v897 = vpop.f32.mrb[0].mxu0
        %v898 = vadd.f32 0.0, %v897
        %899 = vmatprep.mubr.f32.mxu0 0.0
        %900 = vmatmul.mubr.f32.gmra.mrb[0].mxu0 %v270
        %v901 = vpop.f32.mrb[0].mxu0
        %v902 = vadd.f32 0.0, %v901
        %v903 = vpop.f32.mrb[0].mxu0
        %v904 = vadd.f32 0.0, %v903
        %905 = vdwg.mxu0
        %v906 = vmul.f32 %v453, %v795
        %v907 = vmul.f32 %v453, %v797
        %v908 = vmul.f32 %v453, %v884
        %v909 = vmul.f32 %v453, %v886
        %v910 = vmul.f32 %v458, %v801
        %v911 = vmul.f32 %v458, %v803
        %v912 = vmul.f32 %v458, %v890
        %v913 = vmul.f32 %v458, %v892
        %v914 = vmul.f32 %v463, %v807
        %v915 = vmul.f32 %v463, %v809
        %v916 = vmul.f32 %v463, %v896
        %v917 = vmul.f32 %v463, %v898
        %v918 = vmul.f32 %v468, %v813
        %v919 = vmul.f32 %v468, %v815
        %v920 = vmul.f32 %v468, %v902
        %v921 = vmul.f32 %v468, %v904
        %v922 = vadd.f32 %v906, %v488
        %v923 = vadd.f32 %v907, %v488
        %v924 = vadd.f32 %v908, %v488
        %v925 = vadd.f32 %v909, %v488
        %v926 = vadd.f32 %v910, %v492
        %v927 = vadd.f32 %v911, %v492
        %v928 = vadd.f32 %v912, %v492
        %v929 = vadd.f32 %v913, %v492
        %v930 = vadd.f32 %v914, %v496
        %v931 = vadd.f32 %v915, %v496
        %v932 = vadd.f32 %v916, %v496
        %v933 = vadd.f32 %v917, %v496
        %v934 = vadd.f32 %v918, %v500
        %v935 = vadd.f32 %v919, %v500
        %v936 = vadd.f32 %v920, %v500
        %v937 = vadd.f32 %v921, %v500
        %v938 = vmul.f32 %v922, %v795
        %v939 = vmul.f32 %v923, %v797
        %v940 = vmul.f32 %v924, %v884
        %v941 = vmul.f32 %v925, %v886
        %v942 = vmul.f32 %v926, %v801
        %v943 = vmul.f32 %v927, %v803
        %v944 = vmul.f32 %v928, %v890
        %v945 = vmul.f32 %v929, %v892
        %v946 = vmul.f32 %v930, %v807
        %v947 = vmul.f32 %v931, %v809
        %v948 = vmul.f32 %v932, %v896
        %v949 = vmul.f32 %v933, %v898
        %v950 = vmul.f32 %v934, %v813
        %v951 = vmul.f32 %v935, %v815
        %v952 = vmul.f32 %v936, %v902
        %v953 = vmul.f32 %v937, %v904
        %v954 = vadd.f32 %v938, %v536
        %v955 = vadd.f32 %v939, %v536
        %v956 = vadd.f32 %v940, %v536
        %v957 = vadd.f32 %v941, %v536
        %v958 = vadd.f32 %v942, %v540
        %v959 = vadd.f32 %v943, %v540
        %v960 = vadd.f32 %v944, %v540
        %v961 = vadd.f32 %v945, %v540
        %v962 = vadd.f32 %v946, %v544
        %v963 = vadd.f32 %v947, %v544
        %v964 = vadd.f32 %v948, %v544
        %v965 = vadd.f32 %v949, %v544
        %v966 = vadd.f32 %v950, %v548
        %v967 = vadd.f32 %v951, %v548
        %v968 = vadd.f32 %v952, %v548
        %v969 = vadd.f32 %v953, %v548
        %970 = vmatprep.subr.mxu0 %v955
        %971 = vmatpush1.msra.mxu0 %v954
        %972 = vmatprep.subr.mxu0 %v959
        %973 = vmatpush1.msra.mxu0 %v958
        %974 = vmatprep.subr.mxu0 %v963
        %975 = vmatpush1.msra.mxu0 %v962
        %976 = vmatprep.subr.mxu0 %v967
        %977 = vmatpush1.msra.mxu0 %v966
        %978 = vmatprep.subr.mxu0 0.0
        %979 = vmatpush1.msra.mxu0 0.0
        %980 = vmatprep.subr.mxu0 0.0
        %981 = vmatpush1.msra.mxu0 0.0
        %982 = vmatprep.subr.mxu0 0.0
        %983 = vmatpush1.msra.mxu0 0.0
        %984 = vmatprep.subr.mxu0 0.0
        %985 = vmatpush1.msra.mxu0 0.0
        %986 = vmatprep.subr.mxu0 0.0
        %987 = vmatpush1.msra.mxu0 0.0
        %988 = vmatprep.subr.mxu0 0.0
        %989 = vmatpush1.msra.mxu0 0.0
        %990 = vmatprep.subr.mxu0 0.0
        %991 = vmatpush1.msra.mxu0 0.0
        %992 = vmatprep.subr.mxu0 0.0
        %993 = vmatpush1.msra.mxu0 0.0
        %994 = vmatprep.subr.mxu0 0.0
        %995 = vmatpush1.msra.mxu0 0.0
        %996 = vmatprep.subr.mxu0 0.0
        %997 = vmatpush1.msra.mxu0 0.0
        %998 = vmatprep.subr.mxu0 0.0
        %999 = vmatpush1.msra.mxu0 0.0
        %1000 = vmatprep.subr.mxu0 0.0
        %1001 = vmatpush1.msra.mxu0 0.0
        %1002 = vmatprep.subr.mxu0 0.0
        %1003 = vmatpush1.msra.mxu0 0.0
        %1004 = vmatprep.subr.mxu0 0.0
        %1005 = vmatpush1.msra.mxu0 0.0
        %1006 = vmatprep.subr.mxu0 0.0
        %1007 = vmatpush1.msra.mxu0 0.0
        %1008 = vmatprep.subr.mxu0 0.0
        %1009 = vmatpush1.msra.mxu0 0.0
        %1010 = vmatprep.subr.mxu0 0.0
        %1011 = vmatpush1.msra.mxu0 0.0
        %1012 = vmatprep.subr.mxu0 0.0
        %1013 = vmatpush1.msra.mxu0 0.0
        %1014 = vmatprep.subr.mxu0 0.0
        %1015 = vmatpush1.msra.mxu0 0.0
        %1016 = vmatprep.subr.mxu0 0.0
        %1017 = vmatpush1.msra.mxu0 0.0
        %1018 = vmatprep.subr.mxu0 0.0
        %1019 = vmatpush1.msra.mxu0 0.0
        %1020 = vmatprep.subr.mxu0 0.0
        %1021 = vmatpush1.msra.mxu0 0.0
        %1022 = vmatprep.subr.mxu0 0.0
        %1023 = vmatpush1.msra.mxu0 0.0
        %1024 = vmatprep.subr.mxu0 0.0
        %1025 = vmatpush1.msra.mxu0 0.0
        %1026 = vmatprep.subr.mxu0 0.0
        %1027 = vmatpush1.msra.mxu0 0.0
        %1028 = vmatprep.subr.mxu0 0.0
        %1029 = vmatpush1.msra.mxu0 0.0
        %1030 = vmatprep.subr.mxu0 0.0
        %1031 = vmatpush1.msra.mxu0 0.0
        %1032 = vmatprep.subr.mxu0 0.0
        %1033 = vmatpush1.msra.mxu0 0.0
        %1034 = vmatprep.mubr.f32.mxu0 0.0
        %1035 = vmatmul.mubr.f32.gmra.mrb[0].mxu0 %v573
        %v1036 = vpop.f32.mrb[0].mxu0
        %v1037 = vadd.f32 %v569, %v1036
        %v1038 = vpop.f32.mrb[0].mxu0
        %v1039 = vadd.f32 %v569, %v1038
        %1040 = vdwg.mxu0
        %1041 = vmatprep.subr.mxu0 %v957
        %1042 = vmatpush1.msra.mxu0 %v956
        %1043 = vmatprep.subr.mxu0 %v961
        %1044 = vmatpush1.msra.mxu0 %v960
        %1045 = vmatprep.subr.mxu0 %v965
        %1046 = vmatpush1.msra.mxu0 %v964
        %1047 = vmatprep.subr.mxu0 %v969
        %1048 = vmatpush1.msra.mxu0 %v968
        %1049 = vmatprep.subr.mxu0 0.0
        %1050 = vmatpush1.msra.mxu0 0.0
        %1051 = vmatprep.subr.mxu0 0.0
        %1052 = vmatpush1.msra.mxu0 0.0
        %1053 = vmatprep.subr.mxu0 0.0
        %1054 = vmatpush1.msra.mxu0 0.0
        %1055 = vmatprep.subr.mxu0 0.0
        %1056 = vmatpush1.msra.mxu0 0.0
        %1057 = vmatprep.subr.mxu0 0.0
        %1058 = vmatpush1.msra.mxu0 0.0
        %1059 = vmatprep.subr.mxu0 0.0
        %1060 = vmatpush1.msra.mxu0 0.0
        %1061 = vmatprep.subr.mxu0 0.0
        %1062 = vmatpush1.msra.mxu0 0.0
        %1063 = vmatprep.subr.mxu0 0.0
        %1064 = vmatpush1.msra.mxu0 0.0
        %1065 = vmatprep.subr.mxu0 0.0
        %1066 = vmatpush1.msra.mxu0 0.0
        %1067 = vmatprep.subr.mxu0 0.0
        %1068 = vmatpush1.msra.mxu0 0.0
        %1069 = vmatprep.subr.mxu0 0.0
        %1070 = vmatpush1.msra.mxu0 0.0
        %1071 = vmatprep.subr.mxu0 0.0
        %1072 = vmatpush1.msra.mxu0 0.0
        %1073 = vmatprep.subr.mxu0 0.0
        %1074 = vmatpush1.msra.mxu0 0.0
        %1075 = vmatprep.subr.mxu0 0.0
        %1076 = vmatpush1.msra.mxu0 0.0
        %1077 = vmatprep.subr.mxu0 0.0
        %1078 = vmatpush1.msra.mxu0 0.0
        %1079 = vmatprep.subr.mxu0 0.0
        %1080 = vmatpush1.msra.mxu0 0.0
        %1081 = vmatprep.subr.mxu0 0.0
        %1082 = vmatpush1.msra.mxu0 0.0
        %1083 = vmatprep.subr.mxu0 0.0
        %1084 = vmatpush1.msra.mxu0 0.0
        %1085 = vmatprep.subr.mxu0 0.0
        %1086 = vmatpush1.msra.mxu0 0.0
        %1087 = vmatprep.subr.mxu0 0.0
        %1088 = vmatpush1.msra.mxu0 0.0
        %1089 = vmatprep.subr.mxu0 0.0
        %1090 = vmatpush1.msra.mxu0 0.0
        %1091 = vmatprep.subr.mxu0 0.0
        %1092 = vmatpush1.msra.mxu0 0.0
        %1093 = vmatprep.subr.mxu0 0.0
        %1094 = vmatpush1.msra.mxu0 0.0
        %1095 = vmatprep.subr.mxu0 0.0
        %1096 = vmatpush1.msra.mxu0 0.0
        %1097 = vmatprep.subr.mxu0 0.0
        %1098 = vmatpush1.msra.mxu0 0.0
        %1099 = vmatprep.subr.mxu0 0.0
        %1100 = vmatpush1.msra.mxu0 0.0
        %1101 = vmatprep.subr.mxu0 0.0
        %1102 = vmatpush1.msra.mxu0 0.0
        %1103 = vmatprep.subr.mxu0 0.0
        %1104 = vmatpush1.msra.mxu0 0.0
        %1105 = vmatprep.mubr.f32.mxu0 0.0
        %1106 = vmatmul.mubr.f32.gmra.mrb[0].mxu0 %v573
        %v1107 = vpop.f32.mrb[0].mxu0
        %v1108 = vadd.f32 %v569, %v1107
        %v1109 = vpop.f32.mrb[0].mxu0
        %v1110 = vadd.f32 %v569, %v1109
        %1111 = vdwg.mxu0
        %s1112 = smul.addr %s721, 8
        %s1113 = scalar_lea.vmem %s242, %s1112 [#allocation5]
        %1114 = vst [vmem:[%s1113] sm:$0xff] %v1037
        %1115 = vst [vmem:[%s1113 + $0x8] sm:$0xff] %v1039
        %1116 = vst [vmem:[%s1113 + $0x10] sm:$0xff] %v1108
        %1117 = vst [vmem:[%s1113 + $0x18] sm:$0xff] %v1110
        %s1118 = sand.u32 %s140, 1
        %s1119 = scalar_lea.sflag [#allocation4], %s1118
        %s1120 = sand.u32 %s140, 1
        %s1121 = smul.addr %s1120, 64
        %s1122 = scalar_lea.vmem [#allocation5], %s1121
        // Predicated region
        $region45: #{tpu_custom_call.1} parent=39 // pred_check
          %p1123 = pneg %p150
        $region46: #{tpu_custom_call.1} parent=39 // pred_check_branch
          %1125 = sbr.rel (%p1123) target = $region48
        $region47: #{tpu_custom_call.1} parent=39 // pred_region
          %s1126 = smul.u32 4, %s22
          %s1128 = ssub.s32 1024, 1024
          %1129 = vsyncadd %s1119, %s1128
          %s1130 = smul.addr %s1126, 128
          %s1131 = scalar_lea.hbm %s5, %s1130
          %s1132 = sshll.u32 %s1122, 4
          %s1133 = int_to_ptr.vmem [resolvable:$true] %s1132
          %1138 = dma.vmem_to_hbm [thread:$0]  %s1133, 1024, %s1131, %s1119, 512, 1024, 32
        $region48: #{tpu_custom_call.1} parent=39 // pred_fallthru
          _
      $region40: #{tpu_custom_call.1} parent=5 // pred_fallthru
        _
      %p1139 = scmp.le.s32.totalorder 2, %s17
      // Predicated region
      $region49: #{tpu_custom_call.1} parent=5 // pred_check
        %p1140 = pneg %p1139
      $region50: #{tpu_custom_call.1} parent=5 // pred_check_branch
        %1142 = sbr.rel (%p1140) target = $region52
      $region51: #{tpu_custom_call.1} parent=5 // pred_region
        %s1143 = ssub.s32 %s17, 2
        // Predicated region
        $region53: #{tpu_custom_call.1} parent=51 // pred_check
          %p1144 = pneg %p156
        $region54: #{tpu_custom_call.1} parent=51 // pred_check_branch
          %1146 = sbr.rel (%p1144) target = $region56
        $region55: #{tpu_custom_call.1} parent=51 // pred_region
          %s1147 = sand.u32 %s141, 1
          %s1148 = scalar_lea.sflag [#allocation4], %s1147
          %s1149 = sand.u32 %s141, 1
          %s1150 = smul.addr %s1149, 64
          %s1151 = scalar_lea.vmem [#allocation5], %s1150
          %1152 = dma.done %s1148, 1024
        $region56: #{tpu_custom_call.1} parent=51 // pred_fallthru
          _
      $region52: #{tpu_custom_call.1} parent=5 // pred_fallthru
        _
    $region6: #{tpu_custom_call.1} parent=1 // loop_footer
      %s21 = sadd.s32 1, %s17
    $region7: #{tpu_custom_call.1} parent=1 // loop_footer_branch
      %16 = sbr.rel target = $region3
    $region8: #{tpu_custom_call.1} parent=1 // loop_exit
      _
    %1153 = vsyncpa [#allocation3], 1
    %s1154 = scalar_lea.sflag [#allocation3], 1
    %1155 = vsyncpa %s1154, 1
    %1156 = vsyncpa [#allocation4], 1
    %s1157 = scalar_lea.sflag [#allocation4], 1
    %1158 = vsyncpa %s1157, 1

</llo_original>
